<compile_context>
chip_gen: v5e
topology: v5e:2x2
jax: 0.10.0
libtpu: 0.0.40
codegen_flags: <defaults>
</compile_context>

<pallas_src>
import jax
import jax.numpy as jnp
from jax import lax
from jax.experimental import pallas as pl
from jax.experimental.pallas import tpu as pltpu

NUM_FTRS = 512  # resnet18 branch: self.num_ftrs = 512


def _round_up(x, m):
    return (x + m - 1) // m * m


# ----------------------------------------------------------------------------
# Fused kernel: GAP + flatten + Linear(512, n_out) + predict reduction
#   logits = mean_hw(x) @ W + b
#   maxv   = max(softmax(logits)) = 1 / sum(exp(logits - max(logits)))
#   idx    = argmax(logits)  (== argmax of exp(logsoftmax(logits)))
# ----------------------------------------------------------------------------
def fused_head_predict_kernel(x_ref, w_ref, b_ref, logits_ref, val_ref, idx_ref):
    x = x_ref[...]                                   # (tn, HW, C) f32, C on lanes
    pooled = jnp.mean(x, axis=1)                     # (tn, C)  == GAP + flatten
    logits = jnp.dot(pooled, w_ref[...],
                     preferred_element_type=jnp.float32) + b_ref[...]   # (tn, n_out)
    logits_ref[...] = logits

    n_out = logits.shape[1]
    m = jnp.max(logits, axis=1, keepdims=True)                       # (tn, 1)
    sum_exp = jnp.sum(jnp.exp(logits - m), axis=1, keepdims=True)    # (tn, 1)
    val_ref[...] = 1.0 / sum_exp                     # exact divide (tolerance-safe)

    # first index attaining the max logit (matches torch.max tie-breaking)
    col = lax.broadcasted_iota(jnp.int32, logits.shape, 1)
    idx = jnp.min(jnp.where(logits == m, col, n_out), axis=1, keepdims=True)
    idx_ref[...] = idx.astype(jnp.int32)


def deepnet_head_predict(x_feat_nchw, w, b, *, tile_n=64):
    """
    x_feat_nchw: (N, 512, H, W) f32 backbone features (pre-GAP).
    w: (512, n_out), b: (n_out,)
    Returns (logits (N, n_out), max_probs (N, 1), argmax (N, 1) int32).

    tile_n=64 keeps the double-buffered x tile (~2 * tile_n*HW*C*4B) well under
    v7x's 32 MiB scoped VMEM; v5e/v6e could take a larger tile.
    """
    N, C, H, W = x_feat_nchw.shape
    n_out = w.shape[1]
    HW = H * W

    # NHWC-flattened layout: C=512 on the 128-lane axis; GAP reduces sublanes.
    # (Wrapper-side transpose is layout plumbing outside the kernel.)
    x_nhwc = jnp.transpose(x_feat_nchw, (0, 2, 3, 1)).reshape(N, HW, C)
    x_nhwc = x_nhwc.astype(jnp.float32)
    # TODO(synk): on v6e/v7x, casting x/w to bf16 halves HBM traffic with no
    # MXU penalty (keep f32 accumulate); kept f32 here for exact verification.

    tn = min(tile_n, _round_up(N, 8))
    n_pad = _round_up(N, tn)
    if n_pad != N:
        x_nhwc = jnp.pad(x_nhwc, ((0, n_pad - N), (0, 0), (0, 0)))
    b2 = b.reshape(1, n_out).astype(jnp.float32)

    logits, maxv, idx = pl.pallas_call(
        fused_head_predict_kernel,
        out_shape=(
            jax.ShapeDtypeStruct((n_pad, n_out), jnp.float32),
            jax.ShapeDtypeStruct((n_pad, 1), jnp.float32),
            jax.ShapeDtypeStruct((n_pad, 1), jnp.int32),
        ),
        grid=(n_pad // tn,),
        in_specs=[
            pl.BlockSpec((tn, HW, C), lambda i: (i, 0, 0)),
            pl.BlockSpec((C, n_out), lambda i: (0, 0)),
            pl.BlockSpec((1, n_out), lambda i: (0, 0)),
        ],
        out_specs=(
            pl.BlockSpec((tn, n_out), lambda i: (i, 0)),
            pl.BlockSpec((tn, 1), lambda i: (i, 0)),
            pl.BlockSpec((tn, 1), lambda i: (i, 0)),
        ),
        compiler_params=pltpu.CompilerParams(
            dimension_semantics=("parallel",),
        ),
    )(x_nhwc, w.astype(jnp.float32), b2)

    return logits[:N], maxv[:N], idx[:N]


# ----------------------------------------------------------------------------
# Reference (plain JAX) for verification
# ----------------------------------------------------------------------------
def reference(x_feat, w, b):
    pooled = jnp.mean(x_feat.reshape(x_feat.shape[0], x_feat.shape[1], -1), axis=-1)
    logits = pooled @ w + b
    logp = jax.nn.log_softmax(logits, axis=1)
    p = jnp.exp(logp)
    return logits, jnp.max(p, axis=1), jnp.argmax(p, axis=1)


if __name__ == "__main__":
    key = jax.random.PRNGKey(0)
    k1, k2, k3 = jax.random.split(key, 3)

    N, C, H, W = 2, NUM_FTRS, 7, 7          # resnet18 pre-pool feature shape
    n_outputs = 10

    # Deterministic synthetic backbone features + head parameters.
    x_feat = jax.random.normal(k1, (N, C, H, W), dtype=jnp.float32)
    fc_w = 0.02 * jax.random.normal(k2, (C, n_outputs), dtype=jnp.float32)
    fc_b = 0.01 * jax.random.normal(k3, (n_outputs,), dtype=jnp.float32)

    # forward() head output + predict() = torch.max(exp(logsoftmax(logits)), dim=1)
    logits, max_vals, max_idx = deepnet_head_predict(x_feat, fc_w, fc_b)
    jax.block_until_ready((logits, max_vals, max_idx))

    ref_logits, ref_vals, ref_idx = reference(x_feat, fc_w, fc_b)
    assert jnp.allclose(logits, ref_logits, atol=1e-4, rtol=1e-4)
    assert jnp.allclose(max_vals[:, 0], ref_vals, atol=1e-5, rtol=1e-5)
    assert jnp.array_equal(max_idx[:, 0], ref_idx.astype(jnp.int32))

    print("KERNEL_OK")
</pallas_src>

<mosaic_0001>
module attributes {stable_mosaic.version = 11 : i64} {
  func.func @fused_head_predict_kernel(%arg0: i32, %arg1: memref<8x49x512xf32, #tpu.memory_space<vmem>>, %arg2: memref<512x10xf32, #tpu.memory_space<vmem>>, %arg3: memref<1x10xf32, #tpu.memory_space<vmem>>, %arg4: memref<8x10xf32, #tpu.memory_space<vmem>>, %arg5: memref<8x1xf32, #tpu.memory_space<vmem>>, %arg6: memref<8x1xi32, #tpu.memory_space<vmem>>) attributes {dimension_semantics = [#tpu.dimension_semantics<parallel>], iteration_bounds = array<i64: 1>, scalar_prefetch = 0 : i64, scratch_operands = 0 : i64, tpu.core_type = #tpu.core_type<tc>, window_params = [{transform_indices = @transform_0, window_bounds = array<i64: 8, 49, 512>}, {pipeline_mode = #tpu.pipeline_mode<synchronous>, transform_indices = @transform_1, window_bounds = array<i64: 512, 10>}, {pipeline_mode = #tpu.pipeline_mode<synchronous>, transform_indices = @transform_2, window_bounds = array<i64: 1, 10>}, {transform_indices = @transform_3, window_bounds = array<i64: 8, 10>}, {transform_indices = @transform_4, window_bounds = array<i64: 8, 1>}, {transform_indices = @transform_5, window_bounds = array<i64: 8, 1>}]} {
    %c0 = arith.constant 0 : index
    %c0_0 = arith.constant 0 : index
    %c0_1 = arith.constant 0 : index
    %0 = vector.load %arg1[%c0, %c0_0, %c0_1] : memref<8x49x512xf32, #tpu.memory_space<vmem>>, vector<8x49x512xf32>
    %cst = arith.constant dense<0.000000e+00> : vector<8x512xf32>
    %1 = vector.multi_reduction <add>, %0, %cst [1] : vector<8x49x512xf32> to vector<8x512xf32>
    %cst_2 = arith.constant 4.900000e+01 : f32
    %2 = vector.broadcast %cst_2 : f32 to vector<8x512xf32>
    %3 = arith.divf %1, %2 : vector<8x512xf32>
    %c0_3 = arith.constant 0 : index
    %c0_4 = arith.constant 0 : index
    %4 = vector.load %arg2[%c0_3, %c0_4] : memref<512x10xf32, #tpu.memory_space<vmem>>, vector<512x10xf32>
    %cst_5 = arith.constant dense<0.000000e+00> : vector<8x10xf32>
    %5 = tpu.matmul %3, %4, %cst_5 {dimension_numbers = #tpu.dot_dimension_numbers<[1], [0], [0], [1], [0, 0, 1, 1], [], []>} : vector<8x512xf32>, vector<512x10xf32>, vector<8x10xf32> -> vector<8x10xf32>
    %c0_6 = arith.constant 0 : index
    %c0_7 = arith.constant 0 : index
    %6 = vector.load %arg3[%c0_6, %c0_7] : memref<1x10xf32, #tpu.memory_space<vmem>>, vector<1x10xf32>
    %7 = vector.broadcast %6 : vector<1x10xf32> to vector<8x10xf32>
    %8 = arith.addf %5, %7 : vector<8x10xf32>
    %c0_8 = arith.constant 0 : index
    %c0_9 = arith.constant 0 : index
    %9 = vector.load %arg4[%c0_8, %c0_9] : memref<8x10xf32, #tpu.memory_space<vmem>>, vector<8x10xf32>
    tpu.vector_store %arg4[%c0_8, %c0_9], %8 {strides = array<i32>} : memref<8x10xf32, #tpu.memory_space<vmem>>, vector<8x10xf32>,
    %cst_10 = arith.constant dense<0xFF800000> : vector<8xf32>
    %10 = vector.multi_reduction <maximumf>, %8, %cst_10 [1] : vector<8x10xf32> to vector<8xf32>
    %11 = vector.shape_cast %10 : vector<8xf32> to vector<8x1xf32>
    %12 = vector.broadcast %11 : vector<8x1xf32> to vector<8x10xf32>
    %13 = arith.subf %8, %12 : vector<8x10xf32>
    %14 = math.exp %13 : vector<8x10xf32>
    %cst_11 = arith.constant dense<0.000000e+00> : vector<8xf32>
    %15 = vector.multi_reduction <add>, %14, %cst_11 [1] : vector<8x10xf32> to vector<8xf32>
    %16 = vector.shape_cast %15 : vector<8xf32> to vector<8x1xf32>
    %cst_12 = arith.constant 1.000000e+00 : f32
    %17 = vector.broadcast %cst_12 : f32 to vector<8x1xf32>
    %18 = arith.divf %17, %16 : vector<8x1xf32>
    %c0_13 = arith.constant 0 : index
    %c0_14 = arith.constant 0 : index
    %19 = vector.load %arg5[%c0_13, %c0_14] : memref<8x1xf32, #tpu.memory_space<vmem>>, vector<8x1xf32>
    tpu.vector_store %arg5[%c0_13, %c0_14], %18 {strides = array<i32>} : memref<8x1xf32, #tpu.memory_space<vmem>>, vector<8x1xf32>,
    %20 = tpu.iota {dimensions = array<i32: 1>} : vector<8x10xi32>
    %21 = vector.broadcast %11 : vector<8x1xf32> to vector<8x10xf32>
    %22 = arith.cmpf oeq, %8, %21 : vector<8x10xf32>
    %c10_i32 = arith.constant 10 : i32
    %23 = vector.broadcast %c10_i32 : i32 to vector<8x10xi32>
    %24 = arith.select %22, %20, %23 : vector<8x10xi1>, vector<8x10xi32>
    %cst_15 = arith.constant dense<2147483647> : vector<8xi32>
    %25 = vector.multi_reduction <minsi>, %24, %cst_15 [1] : vector<8x10xi32> to vector<8xi32>
    %26 = vector.shape_cast %25 : vector<8xi32> to vector<8x1xi32>
    %c0_16 = arith.constant 0 : index
    %c0_17 = arith.constant 0 : index
    %27 = vector.load %arg6[%c0_16, %c0_17] : memref<8x1xi32, #tpu.memory_space<vmem>>, vector<8x1xi32>
    tpu.vector_store %arg6[%c0_16, %c0_17], %26 {strides = array<i32>} : memref<8x1xi32, #tpu.memory_space<vmem>>, vector<8x1xi32>,
    return
  }
  func.func @transform_0(%arg0: i32) -> (i32, i32, i32) {
    %c0_i32 = arith.constant 0 : i32
    %c0_i32_0 = arith.constant 0 : i32
    %c0_i32_1 = arith.constant 0 : i32
    return %arg0, %c0_i32, %c0_i32_0 : i32, i32, i32
  }
  func.func @transform_1(%arg0: i32) -> (i32, i32) {
    %c0_i32 = arith.constant 0 : i32
    %c0_i32_0 = arith.constant 0 : i32
    %c0_i32_1 = arith.constant 0 : i32
    return %c0_i32, %c0_i32_0 : i32, i32
  }
  func.func @transform_2(%arg0: i32) -> (i32, i32) {
    %c0_i32 = arith.constant 0 : i32
    %c0_i32_0 = arith.constant 0 : i32
    %c0_i32_1 = arith.constant 0 : i32
    return %c0_i32, %c0_i32_0 : i32, i32
  }
  func.func @transform_3(%arg0: i32) -> (i32, i32) {
    %c0_i32 = arith.constant 0 : i32
    %c0_i32_0 = arith.constant 0 : i32
    return %arg0, %c0_i32 : i32, i32
  }
  func.func @transform_4(%arg0: i32) -> (i32, i32) {
    %c0_i32 = arith.constant 0 : i32
    %c0_i32_0 = arith.constant 0 : i32
    return %arg0, %c0_i32 : i32, i32
  }
  func.func @transform_5(%arg0: i32) -> (i32, i32) {
    %c0_i32 = arith.constant 0 : i32
    %c0_i32_0 = arith.constant 0 : i32
    return %arg0, %c0_i32 : i32, i32
  }
}

</mosaic_0001>

<llo_original>
// kernel: tpu_custom_call.1
$region0: #{tpu_custom_call.1}
  #allocation0 [shape = 'u32[]', space=smem, size = 0x4, offset = 0x4, fixed_abs, tag = 'smem constant byte address 0x4 - core index']
  #allocation1 [shape = 'u32[72,128]{1,0:T(1,128)}', space=vmem, size = 0x9000, scoped, tag = 'internal scratch']
  %s0 = inlined_call_operand.vmem [shape: f32[8,49,512], index: 0, kind: input, shape index: {}]
  %s1 = inlined_call_operand.vmem [shape: f32[512,10], index: 1, kind: input, shape index: {}]
  %s2 = inlined_call_operand.vmem [shape: f32[1,10], index: 2, kind: input, shape index: {}]
  %s3 = inlined_call_operand.hbm [shape: f32[8,10], index: 3, kind: output, shape index: {0}]
  %s4 = inlined_call_operand.vmem [shape: f32[8,1], index: 4, kind: output, shape index: {1}]
  %s5 = inlined_call_operand.vmem [shape: s32[8,1], index: 5, kind: output, shape index: {2}]
  %6 = xla_tuple %s3, %s4, %s5
  %s7 = sld [smem:[#allocation0]]
  $region38: #{tpu_custom_call.1} parent=0
    _
  %s9 = ssub.s32 1, %s7
  %s10 = scalar_select 0, %s9, %s7
  $region1: #{tpu_custom_call.1} parent=0
    #allocation2 [shape = 'u8[4096]{0}', space=vmem, size = 0x1000, scoped, tag = 'output window, operand 0, single buffered']
    #allocation3 [shape = 's32[1]{0}', space=sflag, size = 0x4, scoped, tag = 'scoped memory for tpu_custom_call.1']
    %11 = vsyncpa [#allocation3], 0
    // Predicated region
    $region2: #{tpu_custom_call.1} parent=1 // pred_check
      _
    $region3: #{tpu_custom_call.1} parent=1 // pred_check_branch
      %13 = sbr.rel (0) target = $region5
    $region4: #{tpu_custom_call.1} parent=1 // pred_region
      _
    $region5: #{tpu_custom_call.1} parent=1 // pred_fallthru
      _
    // Predicated region
    $region6: #{tpu_custom_call.1} parent=1 // pred_check
      _
    $region7: #{tpu_custom_call.1} parent=1 // pred_check_branch
      %15 = sbr.rel (0) target = $region9
    $region8: #{tpu_custom_call.1} parent=1 // pred_region
      _
    $region9: #{tpu_custom_call.1} parent=1 // pred_fallthru
      _
    // Predicated region
    $region10: #{tpu_custom_call.1} parent=1 // pred_check
      _
    $region11: #{tpu_custom_call.1} parent=1 // pred_check_branch
      %17 = sbr.rel (0) target = $region13
    $region12: #{tpu_custom_call.1} parent=1 // pred_region
      _
    $region13: #{tpu_custom_call.1} parent=1 // pred_fallthru
      _
    %v18 = vld [vmem:[%s0] sm:$0xff]
    %v19 = vld [vmem:[%s0 + $0x8] sm:$0xff]
    %v20 = vld [vmem:[%s0 + $0x10] sm:$0xff]
    %v21 = vld [vmem:[%s0 + $0x18] sm:$0xff]
    %v22 = vld [vmem:[%s0 + $0x20] sm:$0xff]
    %v23 = vld [vmem:[%s0 + $0x28] sm:$0xff]
    %v24 = vld [vmem:[%s0 + $0x30] sm:$0xff]
    %v25 = vld [vmem:[%s0 + $0x38] sm:$0xff]
    %v26 = vld [vmem:[%s0 + $0x40] sm:$0xff]
    %v27 = vld [vmem:[%s0 + $0x48] sm:$0xff]
    %v28 = vld [vmem:[%s0 + $0x50] sm:$0xff]
    %v29 = vld [vmem:[%s0 + $0x58] sm:$0xff]
    %v30 = vld [vmem:[%s0 + $0x60] sm:$0xff]
    %v31 = vld [vmem:[%s0 + $0x68] sm:$0xff]
    %v32 = vld [vmem:[%s0 + $0x70] sm:$0xff]
    %v33 = vld [vmem:[%s0 + $0x78] sm:$0xff]
    %v34 = vld [vmem:[%s0 + $0x80] sm:$0xff]
    %v35 = vld [vmem:[%s0 + $0x88] sm:$0xff]
    %v36 = vld [vmem:[%s0 + $0x90] sm:$0xff]
    %v37 = vld [vmem:[%s0 + $0x98] sm:$0xff]
    %v38 = vld [vmem:[%s0 + $0xa0] sm:$0xff]
    %v39 = vld [vmem:[%s0 + $0xa8] sm:$0xff]
    %v40 = vld [vmem:[%s0 + $0xb0] sm:$0xff]
    %v41 = vld [vmem:[%s0 + $0xb8] sm:$0xff]
    %v42 = vld [vmem:[%s0 + $0xc0] sm:$0x1]
    %v43 = vld [vmem:[%s0 + $0xc8] sm:$0x1]
    %v44 = vld [vmem:[%s0 + $0xd0] sm:$0x1]
    %v45 = vld [vmem:[%s0 + $0xd8] sm:$0x1]
    %v46 = vld [vmem:[%s0 + $0xe0] sm:$0xff]
    %v47 = vld [vmem:[%s0 + $0xe8] sm:$0xff]
    %v48 = vld [vmem:[%s0 + $0xf0] sm:$0xff]
    %v49 = vld [vmem:[%s0 + $0xf8] sm:$0xff]
    %v50 = vld [vmem:[%s0 + $0x100] sm:$0xff]
    %v51 = vld [vmem:[%s0 + $0x108] sm:$0xff]
    %v52 = vld [vmem:[%s0 + $0x110] sm:$0xff]
    %v53 = vld [vmem:[%s0 + $0x118] sm:$0xff]
    %v54 = vld [vmem:[%s0 + $0x120] sm:$0xff]
    %v55 = vld [vmem:[%s0 + $0x128] sm:$0xff]
    %v56 = vld [vmem:[%s0 + $0x130] sm:$0xff]
    %v57 = vld [vmem:[%s0 + $0x138] sm:$0xff]
    %v58 = vld [vmem:[%s0 + $0x140] sm:$0xff]
    %v59 = vld [vmem:[%s0 + $0x148] sm:$0xff]
    %v60 = vld [vmem:[%s0 + $0x150] sm:$0xff]
    %v61 = vld [vmem:[%s0 + $0x158] sm:$0xff]
    %v62 = vld [vmem:[%s0 + $0x160] sm:$0xff]
    %v63 = vld [vmem:[%s0 + $0x168] sm:$0xff]
    %v64 = vld [vmem:[%s0 + $0x170] sm:$0xff]
    %v65 = vld [vmem:[%s0 + $0x178] sm:$0xff]
    %v66 = vld [vmem:[%s0 + $0x180] sm:$0xff]
    %v67 = vld [vmem:[%s0 + $0x188] sm:$0xff]
    %v68 = vld [vmem:[%s0 + $0x190] sm:$0xff]
    %v69 = vld [vmem:[%s0 + $0x198] sm:$0xff]
    %v70 = vld [vmem:[%s0 + $0x1a0] sm:$0x1]
    %v71 = vld [vmem:[%s0 + $0x1a8] sm:$0x1]
    %v72 = vld [vmem:[%s0 + $0x1b0] sm:$0x1]
    %v73 = vld [vmem:[%s0 + $0x1b8] sm:$0x1]
    %v74 = vld [vmem:[%s0 + $0x1c0] sm:$0xff]
    %v75 = vld [vmem:[%s0 + $0x1c8] sm:$0xff]
    %v76 = vld [vmem:[%s0 + $0x1d0] sm:$0xff]
    %v77 = vld [vmem:[%s0 + $0x1d8] sm:$0xff]
    %v78 = vld [vmem:[%s0 + $0x1e0] sm:$0xff]
    %v79 = vld [vmem:[%s0 + $0x1e8] sm:$0xff]
    %v80 = vld [vmem:[%s0 + $0x1f0] sm:$0xff]
    %v81 = vld [vmem:[%s0 + $0x1f8] sm:$0xff]
    %v82 = vld [vmem:[%s0 + $0x200] sm:$0xff]
    %v83 = vld [vmem:[%s0 + $0x208] sm:$0xff]
    %v84 = vld [vmem:[%s0 + $0x210] sm:$0xff]
    %v85 = vld [vmem:[%s0 + $0x218] sm:$0xff]
    %v86 = vld [vmem:[%s0 + $0x220] sm:$0xff]
    %v87 = vld [vmem:[%s0 + $0x228] sm:$0xff]
    %v88 = vld [vmem:[%s0 + $0x230] sm:$0xff]
    %v89 = vld [vmem:[%s0 + $0x238] sm:$0xff]
    %v90 = vld [vmem:[%s0 + $0x240] sm:$0xff]
    %v91 = vld [vmem:[%s0 + $0x248] sm:$0xff]
    %v92 = vld [vmem:[%s0 + $0x250] sm:$0xff]
    %v93 = vld [vmem:[%s0 + $0x258] sm:$0xff]
    %v94 = vld [vmem:[%s0 + $0x260] sm:$0xff]
    %v95 = vld [vmem:[%s0 + $0x268] sm:$0xff]
    %v96 = vld [vmem:[%s0 + $0x270] sm:$0xff]
    %v97 = vld [vmem:[%s0 + $0x278] sm:$0xff]
    %v98 = vld [vmem:[%s0 + $0x280] sm:$0x1]
    %v99 = vld [vmem:[%s0 + $0x288] sm:$0x1]
    %v100 = vld [vmem:[%s0 + $0x290] sm:$0x1]
    %v101 = vld [vmem:[%s0 + $0x298] sm:$0x1]
    %v102 = vld [vmem:[%s0 + $0x2a0] sm:$0xff]
    %v103 = vld [vmem:[%s0 + $0x2a8] sm:$0xff]
    %v104 = vld [vmem:[%s0 + $0x2b0] sm:$0xff]
    %v105 = vld [vmem:[%s0 + $0x2b8] sm:$0xff]
    %v106 = vld [vmem:[%s0 + $0x2c0] sm:$0xff]
    %v107 = vld [vmem:[%s0 + $0x2c8] sm:$0xff]
    %v108 = vld [vmem:[%s0 + $0x2d0] sm:$0xff]
    %v109 = vld [vmem:[%s0 + $0x2d8] sm:$0xff]
    %v110 = vld [vmem:[%s0 + $0x2e0] sm:$0xff]
    %v111 = vld [vmem:[%s0 + $0x2e8] sm:$0xff]
    %v112 = vld [vmem:[%s0 + $0x2f0] sm:$0xff]
    %v113 = vld [vmem:[%s0 + $0x2f8] sm:$0xff]
    %v114 = vld [vmem:[%s0 + $0x300] sm:$0xff]
    %v115 = vld [vmem:[%s0 + $0x308] sm:$0xff]
    %v116 = vld [vmem:[%s0 + $0x310] sm:$0xff]
    %v117 = vld [vmem:[%s0 + $0x318] sm:$0xff]
    %v118 = vld [vmem:[%s0 + $0x320] sm:$0xff]
    %v119 = vld [vmem:[%s0 + $0x328] sm:$0xff]
    %v120 = vld [vmem:[%s0 + $0x330] sm:$0xff]
    %v121 = vld [vmem:[%s0 + $0x338] sm:$0xff]
    %v122 = vld [vmem:[%s0 + $0x340] sm:$0xff]
    %v123 = vld [vmem:[%s0 + $0x348] sm:$0xff]
    %v124 = vld [vmem:[%s0 + $0x350] sm:$0xff]
    %v125 = vld [vmem:[%s0 + $0x358] sm:$0xff]
    %v126 = vld [vmem:[%s0 + $0x360] sm:$0x1]
    %v127 = vld [vmem:[%s0 + $0x368] sm:$0x1]
    %v128 = vld [vmem:[%s0 + $0x370] sm:$0x1]
    %v129 = vld [vmem:[%s0 + $0x378] sm:$0x1]
    %v130 = vld [vmem:[%s0 + $0x380] sm:$0xff]
    %v131 = vld [vmem:[%s0 + $0x388] sm:$0xff]
    %v132 = vld [vmem:[%s0 + $0x390] sm:$0xff]
    %v133 = vld [vmem:[%s0 + $0x398] sm:$0xff]
    %v134 = vld [vmem:[%s0 + $0x3a0] sm:$0xff]
    %v135 = vld [vmem:[%s0 + $0x3a8] sm:$0xff]
    %v136 = vld [vmem:[%s0 + $0x3b0] sm:$0xff]
    %v137 = vld [vmem:[%s0 + $0x3b8] sm:$0xff]
    %v138 = vld [vmem:[%s0 + $0x3c0] sm:$0xff]
    %v139 = vld [vmem:[%s0 + $0x3c8] sm:$0xff]
    %v140 = vld [vmem:[%s0 + $0x3d0] sm:$0xff]
    %v141 = vld [vmem:[%s0 + $0x3d8] sm:$0xff]
    %v142 = vld [vmem:[%s0 + $0x3e0] sm:$0xff]
    %v143 = vld [vmem:[%s0 + $0x3e8] sm:$0xff]
    %v144 = vld [vmem:[%s0 + $0x3f0] sm:$0xff]
    %v145 = vld [vmem:[%s0 + $0x3f8] sm:$0xff]
    %v146 = vld [vmem:[%s0 + $0x400] sm:$0xff]
    %v147 = vld [vmem:[%s0 + $0x408] sm:$0xff]
    %v148 = vld [vmem:[%s0 + $0x410] sm:$0xff]
    %v149 = vld [vmem:[%s0 + $0x418] sm:$0xff]
    %v150 = vld [vmem:[%s0 + $0x420] sm:$0xff]
    %v151 = vld [vmem:[%s0 + $0x428] sm:$0xff]
    %v152 = vld [vmem:[%s0 + $0x430] sm:$0xff]
    %v153 = vld [vmem:[%s0 + $0x438] sm:$0xff]
    %v154 = vld [vmem:[%s0 + $0x440] sm:$0x1]
    %v155 = vld [vmem:[%s0 + $0x448] sm:$0x1]
    %v156 = vld [vmem:[%s0 + $0x450] sm:$0x1]
    %v157 = vld [vmem:[%s0 + $0x458] sm:$0x1]
    %v158 = vld [vmem:[%s0 + $0x460] sm:$0xff]
    %v159 = vld [vmem:[%s0 + $0x468] sm:$0xff]
    %v160 = vld [vmem:[%s0 + $0x470] sm:$0xff]
    %v161 = vld [vmem:[%s0 + $0x478] sm:$0xff]
    %v162 = vld [vmem:[%s0 + $0x480] sm:$0xff]
    %v163 = vld [vmem:[%s0 + $0x488] sm:$0xff]
    %v164 = vld [vmem:[%s0 + $0x490] sm:$0xff]
    %v165 = vld [vmem:[%s0 + $0x498] sm:$0xff]
    %v166 = vld [vmem:[%s0 + $0x4a0] sm:$0xff]
    %v167 = vld [vmem:[%s0 + $0x4a8] sm:$0xff]
    %v168 = vld [vmem:[%s0 + $0x4b0] sm:$0xff]
    %v169 = vld [vmem:[%s0 + $0x4b8] sm:$0xff]
    %v170 = vld [vmem:[%s0 + $0x4c0] sm:$0xff]
    %v171 = vld [vmem:[%s0 + $0x4c8] sm:$0xff]
    %v172 = vld [vmem:[%s0 + $0x4d0] sm:$0xff]
    %v173 = vld [vmem:[%s0 + $0x4d8] sm:$0xff]
    %v174 = vld [vmem:[%s0 + $0x4e0] sm:$0xff]
    %v175 = vld [vmem:[%s0 + $0x4e8] sm:$0xff]
    %v176 = vld [vmem:[%s0 + $0x4f0] sm:$0xff]
    %v177 = vld [vmem:[%s0 + $0x4f8] sm:$0xff]
    %v178 = vld [vmem:[%s0 + $0x500] sm:$0xff]
    %v179 = vld [vmem:[%s0 + $0x508] sm:$0xff]
    %v180 = vld [vmem:[%s0 + $0x510] sm:$0xff]
    %v181 = vld [vmem:[%s0 + $0x518] sm:$0xff]
    %v182 = vld [vmem:[%s0 + $0x520] sm:$0x1]
    %v183 = vld [vmem:[%s0 + $0x528] sm:$0x1]
    %v184 = vld [vmem:[%s0 + $0x530] sm:$0x1]
    %v185 = vld [vmem:[%s0 + $0x538] sm:$0x1]
    %v186 = vld [vmem:[%s0 + $0x540] sm:$0xff]
    %v187 = vld [vmem:[%s0 + $0x548] sm:$0xff]
    %v188 = vld [vmem:[%s0 + $0x550] sm:$0xff]
    %v189 = vld [vmem:[%s0 + $0x558] sm:$0xff]
    %v190 = vld [vmem:[%s0 + $0x560] sm:$0xff]
    %v191 = vld [vmem:[%s0 + $0x568] sm:$0xff]
    %v192 = vld [vmem:[%s0 + $0x570] sm:$0xff]
    %v193 = vld [vmem:[%s0 + $0x578] sm:$0xff]
    %v194 = vld [vmem:[%s0 + $0x580] sm:$0xff]
    %v195 = vld [vmem:[%s0 + $0x588] sm:$0xff]
    %v196 = vld [vmem:[%s0 + $0x590] sm:$0xff]
    %v197 = vld [vmem:[%s0 + $0x598] sm:$0xff]
    %v198 = vld [vmem:[%s0 + $0x5a0] sm:$0xff]
    %v199 = vld [vmem:[%s0 + $0x5a8] sm:$0xff]
    %v200 = vld [vmem:[%s0 + $0x5b0] sm:$0xff]
    %v201 = vld [vmem:[%s0 + $0x5b8] sm:$0xff]
    %v202 = vld [vmem:[%s0 + $0x5c0] sm:$0xff]
    %v203 = vld [vmem:[%s0 + $0x5c8] sm:$0xff]
    %v204 = vld [vmem:[%s0 + $0x5d0] sm:$0xff]
    %v205 = vld [vmem:[%s0 + $0x5d8] sm:$0xff]
    %v206 = vld [vmem:[%s0 + $0x5e0] sm:$0xff]
    %v207 = vld [vmem:[%s0 + $0x5e8] sm:$0xff]
    %v208 = vld [vmem:[%s0 + $0x5f0] sm:$0xff]
    %v209 = vld [vmem:[%s0 + $0x5f8] sm:$0xff]
    %v210 = vld [vmem:[%s0 + $0x600] sm:$0x1]
    %v211 = vld [vmem:[%s0 + $0x608] sm:$0x1]
    %v212 = vld [vmem:[%s0 + $0x610] sm:$0x1]
    %v213 = vld [vmem:[%s0 + $0x618] sm:$0x1]
    %v214 = vld [vmem:[%s0 + $0x620] sm:$0xff]
    %v215 = vld [vmem:[%s0 + $0x628] sm:$0xff]
    %v216 = vld [vmem:[%s0 + $0x630] sm:$0xff]
    %v217 = vld [vmem:[%s0 + $0x638] sm:$0xff]
    %v218 = vld [vmem:[%s0 + $0x640] sm:$0xff]
    %v219 = vld [vmem:[%s0 + $0x648] sm:$0xff]
    %v220 = vld [vmem:[%s0 + $0x650] sm:$0xff]
    %v221 = vld [vmem:[%s0 + $0x658] sm:$0xff]
    %v222 = vld [vmem:[%s0 + $0x660] sm:$0xff]
    %v223 = vld [vmem:[%s0 + $0x668] sm:$0xff]
    %v224 = vld [vmem:[%s0 + $0x670] sm:$0xff]
    %v225 = vld [vmem:[%s0 + $0x678] sm:$0xff]
    %v226 = vld [vmem:[%s0 + $0x680] sm:$0xff]
    %v227 = vld [vmem:[%s0 + $0x688] sm:$0xff]
    %v228 = vld [vmem:[%s0 + $0x690] sm:$0xff]
    %v229 = vld [vmem:[%s0 + $0x698] sm:$0xff]
    %v230 = vld [vmem:[%s0 + $0x6a0] sm:$0xff]
    %v231 = vld [vmem:[%s0 + $0x6a8] sm:$0xff]
    %v232 = vld [vmem:[%s0 + $0x6b0] sm:$0xff]
    %v233 = vld [vmem:[%s0 + $0x6b8] sm:$0xff]
    %v234 = vld [vmem:[%s0 + $0x6c0] sm:$0xff]
    %v235 = vld [vmem:[%s0 + $0x6c8] sm:$0xff]
    %v236 = vld [vmem:[%s0 + $0x6d0] sm:$0xff]
    %v237 = vld [vmem:[%s0 + $0x6d8] sm:$0xff]
    %v238 = vld [vmem:[%s0 + $0x6e0] sm:$0x1]
    %v239 = vld [vmem:[%s0 + $0x6e8] sm:$0x1]
    %v240 = vld [vmem:[%s0 + $0x6f0] sm:$0x1]
    %v241 = vld [vmem:[%s0 + $0x6f8] sm:$0x1]
    %v242 = vadd.f32 %v18, %v22
    %v243 = vadd.f32 %v242, %v26
    %v244 = vadd.f32 %v243, %v30
    %v245 = vadd.f32 %v244, %v34
    %v246 = vadd.f32 %v245, %v38
    %vm247 = vcmask 1040384
    %v248 = vsel %vm247, %v42, 0.0
    %v249 = vadd.f32 %v246, %v248
    %v250 = vrot.slane %v249, 4
    %v251 = vadd.f32 %v249, %v250
    %v252 = vrot.slane %v251, 2
    %v253 = vadd.f32 %v251, %v252
    %v254 = vrot.slane %v253, 1
    %v255 = vadd.f32 %v253, %v254
    %v256 = vadd.f32 %v19, %v23
    %v257 = vadd.f32 %v256, %v27
    %v258 = vadd.f32 %v257, %v31
    %v259 = vadd.f32 %v258, %v35
    %v260 = vadd.f32 %v259, %v39
    %v261 = vsel %vm247, %v43, 0.0
    %v262 = vadd.f32 %v260, %v261
    %v263 = vrot.slane %v262, 4
    %v264 = vadd.f32 %v262, %v263
    %v265 = vrot.slane %v264, 2
    %v266 = vadd.f32 %v264, %v265
    %v267 = vrot.slane %v266, 1
    %v268 = vadd.f32 %v266, %v267
    %v269 = vadd.f32 %v20, %v24
    %v270 = vadd.f32 %v269, %v28
    %v271 = vadd.f32 %v270, %v32
    %v272 = vadd.f32 %v271, %v36
    %v273 = vadd.f32 %v272, %v40
    %v274 = vsel %vm247, %v44, 0.0
    %v275 = vadd.f32 %v273, %v274
    %v276 = vrot.slane %v275, 4
    %v277 = vadd.f32 %v275, %v276
    %v278 = vrot.slane %v277, 2
    %v279 = vadd.f32 %v277, %v278
    %v280 = vrot.slane %v279, 1
    %v281 = vadd.f32 %v279, %v280
    %v282 = vadd.f32 %v21, %v25
    %v283 = vadd.f32 %v282, %v29
    %v284 = vadd.f32 %v283, %v33
    %v285 = vadd.f32 %v284, %v37
    %v286 = vadd.f32 %v285, %v41
    %v287 = vsel %vm247, %v45, 0.0
    %v288 = vadd.f32 %v286, %v287
    %v289 = vrot.slane %v288, 4
    %v290 = vadd.f32 %v288, %v289
    %v291 = vrot.slane %v290, 2
    %v292 = vadd.f32 %v290, %v291
    %v293 = vrot.slane %v292, 1
    %v294 = vadd.f32 %v292, %v293
    %v295 = vadd.f32 %v46, %v50
    %v296 = vadd.f32 %v295, %v54
    %v297 = vadd.f32 %v296, %v58
    %v298 = vadd.f32 %v297, %v62
    %v299 = vadd.f32 %v298, %v66
    %v300 = vsel %vm247, %v70, 0.0
    %v301 = vadd.f32 %v299, %v300
    %v302 = vrot.slane %v301, 4
    %v303 = vadd.f32 %v301, %v302
    %v304 = vrot.slane %v303, 2
    %v305 = vadd.f32 %v303, %v304
    %v306 = vrot.slane %v305, 1
    %v307 = vadd.f32 %v305, %v306
    %v308 = vadd.f32 %v47, %v51
    %v309 = vadd.f32 %v308, %v55
    %v310 = vadd.f32 %v309, %v59
    %v311 = vadd.f32 %v310, %v63
    %v312 = vadd.f32 %v311, %v67
    %v313 = vsel %vm247, %v71, 0.0
    %v314 = vadd.f32 %v312, %v313
    %v315 = vrot.slane %v314, 4
    %v316 = vadd.f32 %v314, %v315
    %v317 = vrot.slane %v316, 2
    %v318 = vadd.f32 %v316, %v317
    %v319 = vrot.slane %v318, 1
    %v320 = vadd.f32 %v318, %v319
    %v321 = vadd.f32 %v48, %v52
    %v322 = vadd.f32 %v321, %v56
    %v323 = vadd.f32 %v322, %v60
    %v324 = vadd.f32 %v323, %v64
    %v325 = vadd.f32 %v324, %v68
    %v326 = vsel %vm247, %v72, 0.0
    %v327 = vadd.f32 %v325, %v326
    %v328 = vrot.slane %v327, 4
    %v329 = vadd.f32 %v327, %v328
    %v330 = vrot.slane %v329, 2
    %v331 = vadd.f32 %v329, %v330
    %v332 = vrot.slane %v331, 1
    %v333 = vadd.f32 %v331, %v332
    %v334 = vadd.f32 %v49, %v53
    %v335 = vadd.f32 %v334, %v57
    %v336 = vadd.f32 %v335, %v61
    %v337 = vadd.f32 %v336, %v65
    %v338 = vadd.f32 %v337, %v69
    %v339 = vsel %vm247, %v73, 0.0
    %v340 = vadd.f32 %v338, %v339
    %v341 = vrot.slane %v340, 4
    %v342 = vadd.f32 %v340, %v341
    %v343 = vrot.slane %v342, 2
    %v344 = vadd.f32 %v342, %v343
    %v345 = vrot.slane %v344, 1
    %v346 = vadd.f32 %v344, %v345
    %v347 = vadd.f32 %v74, %v78
    %v348 = vadd.f32 %v347, %v82
    %v349 = vadd.f32 %v348, %v86
    %v350 = vadd.f32 %v349, %v90
    %v351 = vadd.f32 %v350, %v94
    %v352 = vsel %vm247, %v98, 0.0
    %v353 = vadd.f32 %v351, %v352
    %v354 = vrot.slane %v353, 4
    %v355 = vadd.f32 %v353, %v354
    %v356 = vrot.slane %v355, 2
    %v357 = vadd.f32 %v355, %v356
    %v358 = vrot.slane %v357, 1
    %v359 = vadd.f32 %v357, %v358
    %v360 = vadd.f32 %v75, %v79
    %v361 = vadd.f32 %v360, %v83
    %v362 = vadd.f32 %v361, %v87
    %v363 = vadd.f32 %v362, %v91
    %v364 = vadd.f32 %v363, %v95
    %v365 = vsel %vm247, %v99, 0.0
    %v366 = vadd.f32 %v364, %v365
    %v367 = vrot.slane %v366, 4
    %v368 = vadd.f32 %v366, %v367
    %v369 = vrot.slane %v368, 2
    %v370 = vadd.f32 %v368, %v369
    %v371 = vrot.slane %v370, 1
    %v372 = vadd.f32 %v370, %v371
    %v373 = vadd.f32 %v76, %v80
    %v374 = vadd.f32 %v373, %v84
    %v375 = vadd.f32 %v374, %v88
    %v376 = vadd.f32 %v375, %v92
    %v377 = vadd.f32 %v376, %v96
    %v378 = vsel %vm247, %v100, 0.0
    %v379 = vadd.f32 %v377, %v378
    %v380 = vrot.slane %v379, 4
    %v381 = vadd.f32 %v379, %v380
    %v382 = vrot.slane %v381, 2
    %v383 = vadd.f32 %v381, %v382
    %v384 = vrot.slane %v383, 1
    %v385 = vadd.f32 %v383, %v384
    %v386 = vadd.f32 %v77, %v81
    %v387 = vadd.f32 %v386, %v85
    %v388 = vadd.f32 %v387, %v89
    %v389 = vadd.f32 %v388, %v93
    %v390 = vadd.f32 %v389, %v97
    %v391 = vsel %vm247, %v101, 0.0
    %v392 = vadd.f32 %v390, %v391
    %v393 = vrot.slane %v392, 4
    %v394 = vadd.f32 %v392, %v393
    %v395 = vrot.slane %v394, 2
    %v396 = vadd.f32 %v394, %v395
    %v397 = vrot.slane %v396, 1
    %v398 = vadd.f32 %v396, %v397
    %v399 = vadd.f32 %v102, %v106
    %v400 = vadd.f32 %v399, %v110
    %v401 = vadd.f32 %v400, %v114
    %v402 = vadd.f32 %v401, %v118
    %v403 = vadd.f32 %v402, %v122
    %v404 = vsel %vm247, %v126, 0.0
    %v405 = vadd.f32 %v403, %v404
    %v406 = vrot.slane %v405, 4
    %v407 = vadd.f32 %v405, %v406
    %v408 = vrot.slane %v407, 2
    %v409 = vadd.f32 %v407, %v408
    %v410 = vrot.slane %v409, 1
    %v411 = vadd.f32 %v409, %v410
    %v412 = vadd.f32 %v103, %v107
    %v413 = vadd.f32 %v412, %v111
    %v414 = vadd.f32 %v413, %v115
    %v415 = vadd.f32 %v414, %v119
    %v416 = vadd.f32 %v415, %v123
    %v417 = vsel %vm247, %v127, 0.0
    %v418 = vadd.f32 %v416, %v417
    %v419 = vrot.slane %v418, 4
    %v420 = vadd.f32 %v418, %v419
    %v421 = vrot.slane %v420, 2
    %v422 = vadd.f32 %v420, %v421
    %v423 = vrot.slane %v422, 1
    %v424 = vadd.f32 %v422, %v423
    %v425 = vadd.f32 %v104, %v108
    %v426 = vadd.f32 %v425, %v112
    %v427 = vadd.f32 %v426, %v116
    %v428 = vadd.f32 %v427, %v120
    %v429 = vadd.f32 %v428, %v124
    %v430 = vsel %vm247, %v128, 0.0
    %v431 = vadd.f32 %v429, %v430
    %v432 = vrot.slane %v431, 4
    %v433 = vadd.f32 %v431, %v432
    %v434 = vrot.slane %v433, 2
    %v435 = vadd.f32 %v433, %v434
    %v436 = vrot.slane %v435, 1
    %v437 = vadd.f32 %v435, %v436
    %v438 = vadd.f32 %v105, %v109
    %v439 = vadd.f32 %v438, %v113
    %v440 = vadd.f32 %v439, %v117
    %v441 = vadd.f32 %v440, %v121
    %v442 = vadd.f32 %v441, %v125
    %v443 = vsel %vm247, %v129, 0.0
    %v444 = vadd.f32 %v442, %v443
    %v445 = vrot.slane %v444, 4
    %v446 = vadd.f32 %v444, %v445
    %v447 = vrot.slane %v446, 2
    %v448 = vadd.f32 %v446, %v447
    %v449 = vrot.slane %v448, 1
    %v450 = vadd.f32 %v448, %v449
    %v451 = vadd.f32 %v130, %v134
    %v452 = vadd.f32 %v451, %v138
    %v453 = vadd.f32 %v452, %v142
    %v454 = vadd.f32 %v453, %v146
    %v455 = vadd.f32 %v454, %v150
    %v456 = vsel %vm247, %v154, 0.0
    %v457 = vadd.f32 %v455, %v456
    %v458 = vrot.slane %v457, 4
    %v459 = vadd.f32 %v457, %v458
    %v460 = vrot.slane %v459, 2
    %v461 = vadd.f32 %v459, %v460
    %v462 = vrot.slane %v461, 1
    %v463 = vadd.f32 %v461, %v462
    %v464 = vadd.f32 %v131, %v135
    %v465 = vadd.f32 %v464, %v139
    %v466 = vadd.f32 %v465, %v143
    %v467 = vadd.f32 %v466, %v147
    %v468 = vadd.f32 %v467, %v151
    %v469 = vsel %vm247, %v155, 0.0
    %v470 = vadd.f32 %v468, %v469
    %v471 = vrot.slane %v470, 4
    %v472 = vadd.f32 %v470, %v471
    %v473 = vrot.slane %v472, 2
    %v474 = vadd.f32 %v472, %v473
    %v475 = vrot.slane %v474, 1
    %v476 = vadd.f32 %v474, %v475
    %v477 = vadd.f32 %v132, %v136
    %v478 = vadd.f32 %v477, %v140
    %v479 = vadd.f32 %v478, %v144
    %v480 = vadd.f32 %v479, %v148
    %v481 = vadd.f32 %v480, %v152
    %v482 = vsel %vm247, %v156, 0.0
    %v483 = vadd.f32 %v481, %v482
    %v484 = vrot.slane %v483, 4
    %v485 = vadd.f32 %v483, %v484
    %v486 = vrot.slane %v485, 2
    %v487 = vadd.f32 %v485, %v486
    %v488 = vrot.slane %v487, 1
    %v489 = vadd.f32 %v487, %v488
    %v490 = vadd.f32 %v133, %v137
    %v491 = vadd.f32 %v490, %v141
    %v492 = vadd.f32 %v491, %v145
    %v493 = vadd.f32 %v492, %v149
    %v494 = vadd.f32 %v493, %v153
    %v495 = vsel %vm247, %v157, 0.0
    %v496 = vadd.f32 %v494, %v495
    %v497 = vrot.slane %v496, 4
    %v498 = vadd.f32 %v496, %v497
    %v499 = vrot.slane %v498, 2
    %v500 = vadd.f32 %v498, %v499
    %v501 = vrot.slane %v500, 1
    %v502 = vadd.f32 %v500, %v501
    %v503 = vadd.f32 %v158, %v162
    %v504 = vadd.f32 %v503, %v166
    %v505 = vadd.f32 %v504, %v170
    %v506 = vadd.f32 %v505, %v174
    %v507 = vadd.f32 %v506, %v178
    %v508 = vsel %vm247, %v182, 0.0
    %v509 = vadd.f32 %v507, %v508
    %v510 = vrot.slane %v509, 4
    %v511 = vadd.f32 %v509, %v510
    %v512 = vrot.slane %v511, 2
    %v513 = vadd.f32 %v511, %v512
    %v514 = vrot.slane %v513, 1
    %v515 = vadd.f32 %v513, %v514
    %v516 = vadd.f32 %v159, %v163
    %v517 = vadd.f32 %v516, %v167
    %v518 = vadd.f32 %v517, %v171
    %v519 = vadd.f32 %v518, %v175
    %v520 = vadd.f32 %v519, %v179
    %v521 = vsel %vm247, %v183, 0.0
    %v522 = vadd.f32 %v520, %v521
    %v523 = vrot.slane %v522, 4
    %v524 = vadd.f32 %v522, %v523
    %v525 = vrot.slane %v524, 2
    %v526 = vadd.f32 %v524, %v525
    %v527 = vrot.slane %v526, 1
    %v528 = vadd.f32 %v526, %v527
    %v529 = vadd.f32 %v160, %v164
    %v530 = vadd.f32 %v529, %v168
    %v531 = vadd.f32 %v530, %v172
    %v532 = vadd.f32 %v531, %v176
    %v533 = vadd.f32 %v532, %v180
    %v534 = vsel %vm247, %v184, 0.0
    %v535 = vadd.f32 %v533, %v534
    %v536 = vrot.slane %v535, 4
    %v537 = vadd.f32 %v535, %v536
    %v538 = vrot.slane %v537, 2
    %v539 = vadd.f32 %v537, %v538
    %v540 = vrot.slane %v539, 1
    %v541 = vadd.f32 %v539, %v540
    %v542 = vadd.f32 %v161, %v165
    %v543 = vadd.f32 %v542, %v169
    %v544 = vadd.f32 %v543, %v173
    %v545 = vadd.f32 %v544, %v177
    %v546 = vadd.f32 %v545, %v181
    %v547 = vsel %vm247, %v185, 0.0
    %v548 = vadd.f32 %v546, %v547
    %v549 = vrot.slane %v548, 4
    %v550 = vadd.f32 %v548, %v549
    %v551 = vrot.slane %v550, 2
    %v552 = vadd.f32 %v550, %v551
    %v553 = vrot.slane %v552, 1
    %v554 = vadd.f32 %v552, %v553
    %v555 = vadd.f32 %v186, %v190
    %v556 = vadd.f32 %v555, %v194
    %v557 = vadd.f32 %v556, %v198
    %v558 = vadd.f32 %v557, %v202
    %v559 = vadd.f32 %v558, %v206
    %v560 = vsel %vm247, %v210, 0.0
    %v561 = vadd.f32 %v559, %v560
    %v562 = vrot.slane %v561, 4
    %v563 = vadd.f32 %v561, %v562
    %v564 = vrot.slane %v563, 2
    %v565 = vadd.f32 %v563, %v564
    %v566 = vrot.slane %v565, 1
    %v567 = vadd.f32 %v565, %v566
    %v568 = vadd.f32 %v187, %v191
    %v569 = vadd.f32 %v568, %v195
    %v570 = vadd.f32 %v569, %v199
    %v571 = vadd.f32 %v570, %v203
    %v572 = vadd.f32 %v571, %v207
    %v573 = vsel %vm247, %v211, 0.0
    %v574 = vadd.f32 %v572, %v573
    %v575 = vrot.slane %v574, 4
    %v576 = vadd.f32 %v574, %v575
    %v577 = vrot.slane %v576, 2
    %v578 = vadd.f32 %v576, %v577
    %v579 = vrot.slane %v578, 1
    %v580 = vadd.f32 %v578, %v579
    %v581 = vadd.f32 %v188, %v192
    %v582 = vadd.f32 %v581, %v196
    %v583 = vadd.f32 %v582, %v200
    %v584 = vadd.f32 %v583, %v204
    %v585 = vadd.f32 %v584, %v208
    %v586 = vsel %vm247, %v212, 0.0
    %v587 = vadd.f32 %v585, %v586
    %v588 = vrot.slane %v587, 4
    %v589 = vadd.f32 %v587, %v588
    %v590 = vrot.slane %v589, 2
    %v591 = vadd.f32 %v589, %v590
    %v592 = vrot.slane %v591, 1
    %v593 = vadd.f32 %v591, %v592
    %v594 = vadd.f32 %v189, %v193
    %v595 = vadd.f32 %v594, %v197
    %v596 = vadd.f32 %v595, %v201
    %v597 = vadd.f32 %v596, %v205
    %v598 = vadd.f32 %v597, %v209
    %v599 = vsel %vm247, %v213, 0.0
    %v600 = vadd.f32 %v598, %v599
    %v601 = vrot.slane %v600, 4
    %v602 = vadd.f32 %v600, %v601
    %v603 = vrot.slane %v602, 2
    %v604 = vadd.f32 %v602, %v603
    %v605 = vrot.slane %v604, 1
    %v606 = vadd.f32 %v604, %v605
    %v607 = vadd.f32 %v214, %v218
    %v608 = vadd.f32 %v607, %v222
    %v609 = vadd.f32 %v608, %v226
    %v610 = vadd.f32 %v609, %v230
    %v611 = vadd.f32 %v610, %v234
    %v612 = vsel %vm247, %v238, 0.0
    %v613 = vadd.f32 %v611, %v612
    %v614 = vrot.slane %v613, 4
    %v615 = vadd.f32 %v613, %v614
    %v616 = vrot.slane %v615, 2
    %v617 = vadd.f32 %v615, %v616
    %v618 = vrot.slane %v617, 1
    %v619 = vadd.f32 %v617, %v618
    %v620 = vadd.f32 %v215, %v219
    %v621 = vadd.f32 %v620, %v223
    %v622 = vadd.f32 %v621, %v227
    %v623 = vadd.f32 %v622, %v231
    %v624 = vadd.f32 %v623, %v235
    %v625 = vsel %vm247, %v239, 0.0
    %v626 = vadd.f32 %v624, %v625
    %v627 = vrot.slane %v626, 4
    %v628 = vadd.f32 %v626, %v627
    %v629 = vrot.slane %v628, 2
    %v630 = vadd.f32 %v628, %v629
    %v631 = vrot.slane %v630, 1
    %v632 = vadd.f32 %v630, %v631
    %v633 = vadd.f32 %v216, %v220
    %v634 = vadd.f32 %v633, %v224
    %v635 = vadd.f32 %v634, %v228
    %v636 = vadd.f32 %v635, %v232
    %v637 = vadd.f32 %v636, %v236
    %v638 = vsel %vm247, %v240, 0.0
    %v639 = vadd.f32 %v637, %v638
    %v640 = vrot.slane %v639, 4
    %v641 = vadd.f32 %v639, %v640
    %v642 = vrot.slane %v641, 2
    %v643 = vadd.f32 %v641, %v642
    %v644 = vrot.slane %v643, 1
    %v645 = vadd.f32 %v643, %v644
    %v646 = vadd.f32 %v217, %v221
    %v647 = vadd.f32 %v646, %v225
    %v648 = vadd.f32 %v647, %v229
    %v649 = vadd.f32 %v648, %v233
    %v650 = vadd.f32 %v649, %v237
    %v651 = vsel %vm247, %v241, 0.0
    %v652 = vadd.f32 %v650, %v651
    %v653 = vrot.slane %v652, 4
    %v654 = vadd.f32 %v652, %v653
    %v655 = vrot.slane %v654, 2
    %v656 = vadd.f32 %v654, %v655
    %v657 = vrot.slane %v656, 1
    %v658 = vadd.f32 %v656, %v657
    %v659 = vrcp.pop 49.0
    %v660 = vmul.f32 49.0, %v659
    %v661 = vsub.f32 1.0, %v660
    %v662 = vmul.f32 %v659, %v661
    %v663 = vadd.f32 %v659, %v662
    %vm664 = vweird.f32 %v659
    %v665 = vsel %vm664, %v659, %v663
    %v666 = vmul.f32 %v255, %v665
    %v667 = vmul.f32 %v268, %v665
    %v668 = vmul.f32 %v281, %v665
    %v669 = vmul.f32 %v294, %v665
    %v670 = vmul.f32 %v307, %v665
    %v671 = vmul.f32 %v320, %v665
    %v672 = vmul.f32 %v333, %v665
    %v673 = vmul.f32 %v346, %v665
    %v674 = vmul.f32 %v359, %v665
    %v675 = vmul.f32 %v372, %v665
    %v676 = vmul.f32 %v385, %v665
    %v677 = vmul.f32 %v398, %v665
    %v678 = vmul.f32 %v411, %v665
    %v679 = vmul.f32 %v424, %v665
    %v680 = vmul.f32 %v437, %v665
    %v681 = vmul.f32 %v450, %v665
    %v682 = vmul.f32 %v463, %v665
    %v683 = vmul.f32 %v476, %v665
    %v684 = vmul.f32 %v489, %v665
    %v685 = vmul.f32 %v502, %v665
    %v686 = vmul.f32 %v515, %v665
    %v687 = vmul.f32 %v528, %v665
    %v688 = vmul.f32 %v541, %v665
    %v689 = vmul.f32 %v554, %v665
    %v690 = vmul.f32 %v567, %v665
    %v691 = vmul.f32 %v580, %v665
    %v692 = vmul.f32 %v593, %v665
    %v693 = vmul.f32 %v606, %v665
    %v694 = vmul.f32 %v619, %v665
    %v695 = vmul.f32 %v632, %v665
    %v696 = vmul.f32 %v645, %v665
    %v697 = vmul.f32 %v658, %v665
    %v698 = vld [vmem:[%s1] sm:$0xff]
    %v699 = vld [vmem:[%s1 + $0x8] sm:$0xff]
    %v700 = vld [vmem:[%s1 + $0x10] sm:$0xff]
    %v701 = vld [vmem:[%s1 + $0x18] sm:$0xff]
    %v702 = vld [vmem:[%s1 + $0x20] sm:$0xff]
    %v703 = vld [vmem:[%s1 + $0x28] sm:$0xff]
    %v704 = vld [vmem:[%s1 + $0x30] sm:$0xff]
    %v705 = vld [vmem:[%s1 + $0x38] sm:$0xff]
    %v706 = vld [vmem:[%s1 + $0x40] sm:$0xff]
    %v707 = vld [vmem:[%s1 + $0x48] sm:$0xff]
    %v708 = vld [vmem:[%s1 + $0x50] sm:$0xff]
    %v709 = vld [vmem:[%s1 + $0x58] sm:$0xff]
    %v710 = vld [vmem:[%s1 + $0x60] sm:$0xff]
    %v711 = vld [vmem:[%s1 + $0x68] sm:$0xff]
    %v712 = vld [vmem:[%s1 + $0x70] sm:$0xff]
    %v713 = vld [vmem:[%s1 + $0x78] sm:$0xff]
    %v714 = vld [vmem:[%s1 + $0x80] sm:$0xff]
    %v715 = vld [vmem:[%s1 + $0x88] sm:$0xff]
    %v716 = vld [vmem:[%s1 + $0x90] sm:$0xff]
    %v717 = vld [vmem:[%s1 + $0x98] sm:$0xff]
    %v718 = vld [vmem:[%s1 + $0xa0] sm:$0xff]
    %v719 = vld [vmem:[%s1 + $0xa8] sm:$0xff]
    %v720 = vld [vmem:[%s1 + $0xb0] sm:$0xff]
    %v721 = vld [vmem:[%s1 + $0xb8] sm:$0xff]
    %v722 = vld [vmem:[%s1 + $0xc0] sm:$0xff]
    %v723 = vld [vmem:[%s1 + $0xc8] sm:$0xff]
    %v724 = vld [vmem:[%s1 + $0xd0] sm:$0xff]
    %v725 = vld [vmem:[%s1 + $0xd8] sm:$0xff]
    %v726 = vld [vmem:[%s1 + $0xe0] sm:$0xff]
    %v727 = vld [vmem:[%s1 + $0xe8] sm:$0xff]
    %v728 = vld [vmem:[%s1 + $0xf0] sm:$0xff]
    %v729 = vld [vmem:[%s1 + $0xf8] sm:$0xff]
    %v730 = vld [vmem:[%s1 + $0x100] sm:$0xff]
    %v731 = vld [vmem:[%s1 + $0x108] sm:$0xff]
    %v732 = vld [vmem:[%s1 + $0x110] sm:$0xff]
    %v733 = vld [vmem:[%s1 + $0x118] sm:$0xff]
    %v734 = vld [vmem:[%s1 + $0x120] sm:$0xff]
    %v735 = vld [vmem:[%s1 + $0x128] sm:$0xff]
    %v736 = vld [vmem:[%s1 + $0x130] sm:$0xff]
    %v737 = vld [vmem:[%s1 + $0x138] sm:$0xff]
    %v738 = vld [vmem:[%s1 + $0x140] sm:$0xff]
    %v739 = vld [vmem:[%s1 + $0x148] sm:$0xff]
    %v740 = vld [vmem:[%s1 + $0x150] sm:$0xff]
    %v741 = vld [vmem:[%s1 + $0x158] sm:$0xff]
    %v742 = vld [vmem:[%s1 + $0x160] sm:$0xff]
    %v743 = vld [vmem:[%s1 + $0x168] sm:$0xff]
    %v744 = vld [vmem:[%s1 + $0x170] sm:$0xff]
    %v745 = vld [vmem:[%s1 + $0x178] sm:$0xff]
    %v746 = vld [vmem:[%s1 + $0x180] sm:$0xff]
    %v747 = vld [vmem:[%s1 + $0x188] sm:$0xff]
    %v748 = vld [vmem:[%s1 + $0x190] sm:$0xff]
    %v749 = vld [vmem:[%s1 + $0x198] sm:$0xff]
    %v750 = vld [vmem:[%s1 + $0x1a0] sm:$0xff]
    %v751 = vld [vmem:[%s1 + $0x1a8] sm:$0xff]
    %v752 = vld [vmem:[%s1 + $0x1b0] sm:$0xff]
    %v753 = vld [vmem:[%s1 + $0x1b8] sm:$0xff]
    %v754 = vld [vmem:[%s1 + $0x1c0] sm:$0xff]
    %v755 = vld [vmem:[%s1 + $0x1c8] sm:$0xff]
    %v756 = vld [vmem:[%s1 + $0x1d0] sm:$0xff]
    %v757 = vld [vmem:[%s1 + $0x1d8] sm:$0xff]
    %v758 = vld [vmem:[%s1 + $0x1e0] sm:$0xff]
    %v759 = vld [vmem:[%s1 + $0x1e8] sm:$0xff]
    %v760 = vld [vmem:[%s1 + $0x1f0] sm:$0xff]
    %v761 = vld [vmem:[%s1 + $0x1f8] sm:$0xff]
    %v762 = vld [vmem:[%s2] sm:$0x1]
    %v764 = vperm.slane %v762, 0
    %vm798 = vcmask 1041409
    %v799 = vsel %vm798, %v670, %v666
    %vm800 = vcmask 1042434
    %v801 = vsel %vm800, %v674, %v799
    %vm802 = vcmask 1043459
    %v803 = vsel %vm802, %v678, %v801
    %vm804 = vcmask 1044484
    %v805 = vsel %vm804, %v682, %v803
    %vm806 = vcmask 1045509
    %v807 = vsel %vm806, %v686, %v805
    %vm808 = vcmask 1046534
    %v809 = vsel %vm808, %v690, %v807
    %vm810 = vcmask 1047559
    %v811 = vsel %vm810, %v694, %v809
    %v812 = vsel %vm798, %v671, %v667
    %v813 = vsel %vm800, %v675, %v812
    %v814 = vsel %vm802, %v679, %v813
    %v815 = vsel %vm804, %v683, %v814
    %v816 = vsel %vm806, %v687, %v815
    %v817 = vsel %vm808, %v691, %v816
    %v818 = vsel %vm810, %v695, %v817
    %v819 = vsel %vm798, %v672, %v668
    %v820 = vsel %vm800, %v676, %v819
    %v821 = vsel %vm802, %v680, %v820
    %v822 = vsel %vm804, %v684, %v821
    %v823 = vsel %vm806, %v688, %v822
    %v824 = vsel %vm808, %v692, %v823
    %v825 = vsel %vm810, %v696, %v824
    %v826 = vsel %vm798, %v673, %v669
    %v827 = vsel %vm800, %v677, %v826
    %v828 = vsel %vm802, %v681, %v827
    %v829 = vsel %vm804, %v685, %v828
    %v830 = vsel %vm806, %v689, %v829
    %v831 = vsel %vm808, %v693, %v830
    %v832 = vsel %vm810, %v697, %v831
    %837 = vmatpush.msra.mxu0 %v713
    %838 = vmatpush.msra.mxu0 %v712
    %839 = vmatpush.msra.mxu0 %v711
    %840 = vmatpush.msra.mxu0 %v710
    %841 = vmatpush.msra.mxu0 %v709
    %842 = vmatpush.msra.mxu0 %v708
    %843 = vmatpush.msra.mxu0 %v707
    %844 = vmatpush.msra.mxu0 %v706
    %845 = vmatpush.msra.mxu0 %v705
    %846 = vmatpush.msra.mxu0 %v704
    %847 = vmatpush.msra.mxu0 %v703
    %848 = vmatpush.msra.mxu0 %v702
    %849 = vmatpush.msra.mxu0 %v701
    %850 = vmatpush.msra.mxu0 %v700
    %851 = vmatpush.msra.mxu0 %v699
    %852 = vmatpush.msra.mxu0 %v698
    %853 = vmatmul.f32.gmra.mxu0 %v811
    %v854 = vpop.f32.mrf.mxu0
    %v855 = vadd.f32 %v764, %v854
    %856 = vdwg.mxu0
    %857 = vmatpush.msra.mxu0 %v729
    %858 = vmatpush.msra.mxu0 %v728
    %859 = vmatpush.msra.mxu0 %v727
    %860 = vmatpush.msra.mxu0 %v726
    %861 = vmatpush.msra.mxu0 %v725
    %862 = vmatpush.msra.mxu0 %v724
    %863 = vmatpush.msra.mxu0 %v723
    %864 = vmatpush.msra.mxu0 %v722
    %865 = vmatpush.msra.mxu0 %v721
    %866 = vmatpush.msra.mxu0 %v720
    %867 = vmatpush.msra.mxu0 %v719
    %868 = vmatpush.msra.mxu0 %v718
    %869 = vmatpush.msra.mxu0 %v717
    %870 = vmatpush.msra.mxu0 %v716
    %871 = vmatpush.msra.mxu0 %v715
    %872 = vmatpush.msra.mxu0 %v714
    %873 = vmatmul.f32.gmra.mxu0 %v818
    %v874 = vpop.f32.mrf.mxu0
    %v875 = vadd.f32 %v855, %v874
    %876 = vdwg.mxu0
    %877 = vmatpush.msra.mxu0 %v745
    %878 = vmatpush.msra.mxu0 %v744
    %879 = vmatpush.msra.mxu0 %v743
    %880 = vmatpush.msra.mxu0 %v742
    %881 = vmatpush.msra.mxu0 %v741
    %882 = vmatpush.msra.mxu0 %v740
    %883 = vmatpush.msra.mxu0 %v739
    %884 = vmatpush.msra.mxu0 %v738
    %885 = vmatpush.msra.mxu0 %v737
    %886 = vmatpush.msra.mxu0 %v736
    %887 = vmatpush.msra.mxu0 %v735
    %888 = vmatpush.msra.mxu0 %v734
    %889 = vmatpush.msra.mxu0 %v733
    %890 = vmatpush.msra.mxu0 %v732
    %891 = vmatpush.msra.mxu0 %v731
    %892 = vmatpush.msra.mxu0 %v730
    %893 = vmatmul.f32.gmra.mxu0 %v825
    %v894 = vpop.f32.mrf.mxu0
    %v895 = vadd.f32 %v875, %v894
    %896 = vdwg.mxu0
    %897 = vmatpush.msra.mxu0 %v761
    %898 = vmatpush.msra.mxu0 %v760
    %899 = vmatpush.msra.mxu0 %v759
    %900 = vmatpush.msra.mxu0 %v758
    %901 = vmatpush.msra.mxu0 %v757
    %902 = vmatpush.msra.mxu0 %v756
    %903 = vmatpush.msra.mxu0 %v755
    %904 = vmatpush.msra.mxu0 %v754
    %905 = vmatpush.msra.mxu0 %v753
    %906 = vmatpush.msra.mxu0 %v752
    %907 = vmatpush.msra.mxu0 %v751
    %908 = vmatpush.msra.mxu0 %v750
    %909 = vmatpush.msra.mxu0 %v749
    %910 = vmatpush.msra.mxu0 %v748
    %911 = vmatpush.msra.mxu0 %v747
    %912 = vmatpush.msra.mxu0 %v746
    %913 = vmatmul.f32.gmra.mxu0 %v832
    %v914 = vpop.f32.mrf.mxu0
    %v915 = vadd.f32 %v895, %v914
    %916 = vdwg.mxu0
    %vm917 = vcmask 80896
    %918 = vst.msk [vmem:[#allocation2] sm:$0xff] %vm917, %v915
    %v919 = vsel %vm917, %v915, -inf
    %920 = vmax.xlane.f32.xlu0 %v919
    %v921 = vpop.xlane.xlu0 %920
    %v922 = vsub.f32 %v915, %v921
    %v923 = vmul.f32 %v922, 1.442695
    %v924 = vpow.pop %v923
    %v925 = vsel %vm917, %v924, 0.0
    %926 = vadd.xlane.f32.xlu0 %v925
    %v927 = vpop.xlane.xlu0 %926
    %v928 = vrcp.pop %v927
    %v929 = vmul.f32 %v927, %v928
    %v930 = vsub.f32 1.0, %v929
    %v931 = vmul.f32 %v928, %v930
    %v932 = vadd.f32 %v928, %v931
    %vm933 = vweird.f32 %v927
    %vm934 = vweird.f32 %v928
    %vm935 = vmor %vm933, %vm934
    %v936 = vsel %vm935, %v928, %v932
    %v937 = vand.u32 2147483647, %v927
    %vm938 = vcmp.eq.f32.partialorder %v937, 8.507059e+37
    %v939 = vand.u32 %v927, 2147483648
    %v940 = vor.u32 1.1754944e-38, %v939
    %v941 = vsel %vm938, %v940, %v936
    %v942 = vmul.f32 1.0, %v941
    %vm943 = vcmask 7168
    %944 = vst.msk [vmem:[%s4] sm:$0xff] %vm943, %v942
    %v945 = vlaneseq
    %v946 = vand.u32 %v945, 127
    %vm947 = vcmp.eq.f32.partialorder %v915, %v921
    %v948 = vsel %vm947, %v946, 10
    %v949 = vsel %vm917, %v948, 2147483647
    %v950 = vand.u32 %v949, 65535
    %v951 = vshra.s32 %v949, 16
    %v952 = vcvt.s32.f32 %v950
    %v953 = vcvt.s32.f32 %v951
    %954 = vmin.xlane.f32.xlu0 %v953
    %v955 = vpop.xlane.xlu0 %954
    %vm956 = vcmp.eq.f32.partialorder %v953, %v955
    %v957 = vsel %vm956, %v952, inf
    %958 = vmin.xlane.f32.xlu0 %v957
    %v959 = vpop.xlane.xlu0 %958
    %v960 = vcvt.f32.s32 %v959
    %v961 = vcvt.f32.s32 %v955
    %v962 = vshll.u32 %v961, 16
    %v963 = vadd.s32 %v962, %v960
    %964 = vst.msk [vmem:[%s5] sm:$0xff] %vm943, %v963
    // Predicated region
    $region14: #{tpu_custom_call.1} parent=1 // pred_check
      _
    $region15: #{tpu_custom_call.1} parent=1 // pred_check_branch
      %966 = sbr.rel (0) target = $region17
    $region16: #{tpu_custom_call.1} parent=1 // pred_region
      %968 = vsyncadd [#allocation3], 0
      %s970 = sshll.u32 [#allocation2], 4
      %s971 = int_to_ptr.vmem [resolvable:$true] %s970
      %s972 = sshll.u32 %s3, 4
      %s973 = int_to_ptr.hbm [resolvable:$true] %s972
      %975 = dma.vmem_to_hbm [thread:$0]  %s971, 128, %s973, [#allocation3]
    $region17: #{tpu_custom_call.1} parent=1 // pred_fallthru
      _
    // Predicated region
    $region18: #{tpu_custom_call.1} parent=1 // pred_check
      _
    $region19: #{tpu_custom_call.1} parent=1 // pred_check_branch
      %977 = sbr.rel (0) target = $region21
    $region20: #{tpu_custom_call.1} parent=1 // pred_region
      _
    $region21: #{tpu_custom_call.1} parent=1 // pred_fallthru
      _
    // Predicated region
    $region22: #{tpu_custom_call.1} parent=1 // pred_check
      _
    $region23: #{tpu_custom_call.1} parent=1 // pred_check_branch
      %979 = sbr.rel (0) target = $region25
    $region24: #{tpu_custom_call.1} parent=1 // pred_region
      _
    $region25: #{tpu_custom_call.1} parent=1 // pred_fallthru
      _
    // Predicated region
    $region26: #{tpu_custom_call.1} parent=1 // pred_check
      _
    $region27: #{tpu_custom_call.1} parent=1 // pred_check_branch
      %981 = sbr.rel (0) target = $region29
    $region28: #{tpu_custom_call.1} parent=1 // pred_region
      %983 = dma.done [#allocation3], 128
    $region29: #{tpu_custom_call.1} parent=1 // pred_fallthru
      _
    // Predicated region
    $region30: #{tpu_custom_call.1} parent=1 // pred_check
      _
    $region31: #{tpu_custom_call.1} parent=1 // pred_check_branch
      %985 = sbr.rel (0) target = $region33
    $region32: #{tpu_custom_call.1} parent=1 // pred_region
      _
    $region33: #{tpu_custom_call.1} parent=1 // pred_fallthru
      _
    // Predicated region
    $region34: #{tpu_custom_call.1} parent=1 // pred_check
      _
    $region35: #{tpu_custom_call.1} parent=1 // pred_check_branch
      %987 = sbr.rel (0) target = $region37
    $region36: #{tpu_custom_call.1} parent=1 // pred_region
      _
    $region37: #{tpu_custom_call.1} parent=1 // pred_fallthru
      _
    %988 = vsyncpa [#allocation3], 1

</llo_original>
